<compile_context>
chip_gen: v5e
topology: v5e:2x2
jax: 0.10.0
libtpu: 0.0.40
codegen_flags: <defaults>
</compile_context>

<pallas_src>
import jax
import jax.numpy as jnp
from jax import lax
from jax.experimental import pallas as pl
from jax.experimental.pallas import tpu as pltpu


_MAX_BLOCK_ROWS = 1024  # 1024 rows x 1024 lanes x 4 B = 4 MiB / block (2x-buffered: 8 MiB)


def _mix32(x):
    """lowbias32 avalanche hash on uint32 values (vectorized, VALU-only)."""
    x = x ^ (x >> 16)
    x = x * jnp.uint32(0x7FEB352D)
    x = x ^ (x >> 15)
    x = x * jnp.uint32(0x846CA68B)
    x = x ^ (x >> 16)
    return x


def _gen_noise_kernel(seed_ref, o_ref):
    # seed_ref: SMEM scalar-prefetch ref, shape (1,), int32 base seed.
    # o_ref:    VMEM output block of shape (block_rows, lanes).
    i = pl.program_id(0)
    tr, tl = o_ref.shape
    half = tl // 2  # one (u1, u2) pair produces two outputs (left/right half)

    # Globally-unique pair index for every position in this block.
    row = lax.broadcasted_iota(jnp.int32, (tr, half), 0)
    col = lax.broadcasted_iota(jnp.int32, (tr, half), 1)
    pair = (i * tr + row) * half + col

    # Counter-based RNG: two decorrelated 32-bit words per pair.
    c = lax.bitcast_convert_type((pair ^ seed_ref[0]) << 1, jnp.uint32)
    b1 = _mix32(c)                       # even counters
    b2 = _mix32(c + jnp.uint32(1))       # odd counters

    # Mantissa trick: top 23 random bits -> float32 in [1, 2) without convert.
    one = jnp.uint32(0x3F800000)
    v1 = lax.bitcast_convert_type((b1 >> 9) | one, jnp.float32)        # [1, 2)
    u2 = lax.bitcast_convert_type((b2 >> 9) | one, jnp.float32) - 1.0  # [0, 1)
    u1 = 2.0 - v1                                                       # (0, 1]

    # Box-Muller, using both outputs (log/sqrt/cos/sin go to the EUP slot).
    r = jnp.sqrt(jnp.float32(-2.0) * jnp.log(u1))
    theta = jnp.float32(2.0 * 3.141592653589793) * u2
    z1 = r * jnp.cos(theta)
    z2 = r * jnp.sin(theta)

    # Static, lane-aligned slice stores (half >= 128 -> full-lane, unmasked).
    o_ref[:, :half] = z1.astype(o_ref.dtype)
    o_ref[:, half:] = z2.astype(o_ref.dtype)


def gen_noise(input_arr, dim2, seed=0):
    """Pallas equivalent of GenNoise(dim2)(input_arr).

    input_arr: (N, C, *spatial) array (values unused; shape/dtype only).
    Returns:   (N, dim2, *spatial) array of standard-normal noise, same dtype.
    """
    n = input_arr.shape[0]
    spatial = tuple(input_arr.shape[2:])
    dtype = input_arr.dtype

    out_shape = (n, dim2) + spatial
    total = 1
    for d in out_shape:
        total *= d

    # Lane-dense slab geometry.  Prefer a lane width that divides the total
    # element count so there is no tail padding and no extra slice/copy pass
    # over HBM; the final reshape of a contiguous slab is then free.
    lanes = None
    for cand in (1024, 512, 256):
        if total % cand == 0:
            lanes = cand
            break
    padded = lanes is None
    if padded:
        lanes = 512  # rare fallback: total not a multiple of 256

    rows = pl.cdiv(total, lanes)
    block_rows = min(_MAX_BLOCK_ROWS, rows)
    grid_size = pl.cdiv(rows, block_rows)

    seed_arr = jnp.array([seed], dtype=jnp.int32)

    flat = pl.pallas_call(
        _gen_noise_kernel,
        out_shape=jax.ShapeDtypeStruct((rows, lanes), dtype),
        grid_spec=pltpu.PrefetchScalarGridSpec(
            num_scalar_prefetch=1,
            grid=(grid_size,),
            in_specs=[],
            # index_map receives the scalar-prefetch ref as a trailing arg.
            out_specs=pl.BlockSpec((block_rows, lanes), lambda i, seed: (i, 0)),
        ),
        compiler_params=pltpu.CompilerParams(
            # Counter-based RNG has no cross-step state -> safe to shard
            # across TensorCores (helps v7x; neutral on v5e/v6e).
            dimension_semantics=("parallel",),
        ),
    )(seed_arr)

    if padded:
        # Rare path: drop the tail padding, then reshape.
        return flat.reshape(-1)[:total].reshape(out_shape)
    return flat.reshape(out_shape)


if __name__ == "__main__":
    key = jax.random.PRNGKey(0)
    # Small NCHW input consistent with a conv-style module.
    x = jax.random.normal(key, (2, 4, 16, 16), dtype=jnp.float32)
    dim2 = 8

    out = gen_noise(x, dim2, seed=0)
    out = jax.block_until_ready(out)

    assert out.shape == (2, dim2, 16, 16), out.shape
    assert out.dtype == x.dtype, out.dtype
    # Sanity: roughly standard-normal statistics.
    m = float(jnp.mean(out))
    s = float(jnp.std(out))
    assert abs(m) < 0.2 and 0.7 < s < 1.3, (m, s)

    print("KERNEL_OK")
</pallas_src>

<mosaic_0001>
module attributes {stable_mosaic.version = 11 : i64} {
  func.func @_gen_noise_kernel(%arg0: i32, %arg1: memref<1xi32, #tpu.memory_space<smem>>, %arg2: memref<4x1024xf32, #tpu.memory_space<vmem>>) attributes {dimension_semantics = [#tpu.dimension_semantics<parallel>], iteration_bounds = array<i64: 1>, scalar_prefetch = 1 : i64, scratch_operands = 0 : i64, tpu.core_type = #tpu.core_type<tc>, window_params = [{transform_indices = @transform_0, window_bounds = array<i64: 4, 1024>}]} {
    %0 = tpu.iota {dimensions = array<i32: 0>} : vector<4x512xi32>
    %1 = tpu.iota {dimensions = array<i32: 1>} : vector<4x512xi32>
    %c4_i32 = arith.constant 4 : i32
    %2 = arith.muli %arg0, %c4_i32 : i32
    %3 = vector.broadcast %2 : i32 to vector<4x512xi32>
    %4 = arith.addi %3, %0 : vector<4x512xi32>
    %c512_i32 = arith.constant 512 : i32
    %5 = vector.broadcast %c512_i32 : i32 to vector<4x512xi32>
    %6 = arith.muli %4, %5 : vector<4x512xi32>
    %7 = arith.addi %6, %1 : vector<4x512xi32>
    %c0 = arith.constant 0 : index
    %8 = memref.load %arg1[%c0] : memref<1xi32, #tpu.memory_space<smem>>
    %9 = vector.broadcast %8 : i32 to vector<4x512xi32>
    %10 = arith.xori %7, %9 : vector<4x512xi32>
    %c1_i32 = arith.constant 1 : i32
    %11 = vector.broadcast %c1_i32 : i32 to vector<4x512xi32>
    %12 = arith.shli %10, %11 : vector<4x512xi32>
    %13 = tpu.bitcast %12 : vector<4x512xi32> -> vector<4x512xi32>
    %c16_i32 = arith.constant 16 : i32
    %14 = vector.broadcast %c16_i32 : i32 to vector<4x512xi32>
    %15 = arith.shrui %13, %14 : vector<4x512xi32>
    %16 = arith.xori %13, %15 : vector<4x512xi32>
    %c2146121005_i32 = arith.constant 2146121005 : i32
    %17 = vector.broadcast %c2146121005_i32 : i32 to vector<4x512xi32>
    %18 = arith.muli %16, %17 : vector<4x512xi32>
    %c15_i32 = arith.constant 15 : i32
    %19 = vector.broadcast %c15_i32 : i32 to vector<4x512xi32>
    %20 = arith.shrui %18, %19 : vector<4x512xi32>
    %21 = arith.xori %18, %20 : vector<4x512xi32>
    %c-2073254261_i32 = arith.constant -2073254261 : i32
    %22 = vector.broadcast %c-2073254261_i32 : i32 to vector<4x512xi32>
    %23 = arith.muli %21, %22 : vector<4x512xi32>
    %c16_i32_0 = arith.constant 16 : i32
    %24 = vector.broadcast %c16_i32_0 : i32 to vector<4x512xi32>
    %25 = arith.shrui %23, %24 : vector<4x512xi32>
    %26 = arith.xori %23, %25 : vector<4x512xi32>
    %c1_i32_1 = arith.constant 1 : i32
    %27 = vector.broadcast %c1_i32_1 : i32 to vector<4x512xi32>
    %28 = arith.addi %13, %27 : vector<4x512xi32>
    %c16_i32_2 = arith.constant 16 : i32
    %29 = vector.broadcast %c16_i32_2 : i32 to vector<4x512xi32>
    %30 = arith.shrui %28, %29 : vector<4x512xi32>
    %31 = arith.xori %28, %30 : vector<4x512xi32>
    %c2146121005_i32_3 = arith.constant 2146121005 : i32
    %32 = vector.broadcast %c2146121005_i32_3 : i32 to vector<4x512xi32>
    %33 = arith.muli %31, %32 : vector<4x512xi32>
    %c15_i32_4 = arith.constant 15 : i32
    %34 = vector.broadcast %c15_i32_4 : i32 to vector<4x512xi32>
    %35 = arith.shrui %33, %34 : vector<4x512xi32>
    %36 = arith.xori %33, %35 : vector<4x512xi32>
    %c-2073254261_i32_5 = arith.constant -2073254261 : i32
    %37 = vector.broadcast %c-2073254261_i32_5 : i32 to vector<4x512xi32>
    %38 = arith.muli %36, %37 : vector<4x512xi32>
    %c16_i32_6 = arith.constant 16 : i32
    %39 = vector.broadcast %c16_i32_6 : i32 to vector<4x512xi32>
    %40 = arith.shrui %38, %39 : vector<4x512xi32>
    %41 = arith.xori %38, %40 : vector<4x512xi32>
    %c9_i32 = arith.constant 9 : i32
    %42 = vector.broadcast %c9_i32 : i32 to vector<4x512xi32>
    %43 = arith.shrui %26, %42 : vector<4x512xi32>
    %c1065353216_i32 = arith.constant 1065353216 : i32
    %44 = vector.broadcast %c1065353216_i32 : i32 to vector<4x512xi32>
    %45 = arith.ori %43, %44 : vector<4x512xi32>
    %46 = tpu.bitcast %45 : vector<4x512xi32> -> vector<4x512xf32>
    %c9_i32_7 = arith.constant 9 : i32
    %47 = vector.broadcast %c9_i32_7 : i32 to vector<4x512xi32>
    %48 = arith.shrui %41, %47 : vector<4x512xi32>
    %c1065353216_i32_8 = arith.constant 1065353216 : i32
    %49 = vector.broadcast %c1065353216_i32_8 : i32 to vector<4x512xi32>
    %50 = arith.ori %48, %49 : vector<4x512xi32>
    %51 = tpu.bitcast %50 : vector<4x512xi32> -> vector<4x512xf32>
    %cst = arith.constant 1.000000e+00 : f32
    %52 = vector.broadcast %cst : f32 to vector<4x512xf32>
    %53 = arith.subf %51, %52 : vector<4x512xf32>
    %cst_9 = arith.constant 2.000000e+00 : f32
    %54 = vector.broadcast %cst_9 : f32 to vector<4x512xf32>
    %55 = arith.subf %54, %46 : vector<4x512xf32>
    %56 = math.log %55 : vector<4x512xf32>
    %cst_10 = arith.constant -2.000000e+00 : f32
    %57 = vector.broadcast %cst_10 : f32 to vector<4x512xf32>
    %58 = arith.mulf %57, %56 : vector<4x512xf32>
    %59 = math.sqrt %58 : vector<4x512xf32>
    %cst_11 = arith.constant 6.28318548 : f32
    %60 = vector.broadcast %cst_11 : f32 to vector<4x512xf32>
    %61 = arith.mulf %60, %53 : vector<4x512xf32>
    %62 = math.cos %61 : vector<4x512xf32>
    %63 = arith.mulf %59, %62 : vector<4x512xf32>
    %64 = math.sin %61 : vector<4x512xf32>
    %65 = arith.mulf %59, %64 : vector<4x512xf32>
    %c0_12 = arith.constant 0 : index
    %c0_13 = arith.constant 0 : index
    %66 = vector.load %arg2[%c0_12, %c0_13] : memref<4x1024xf32, #tpu.memory_space<vmem>>, vector<4x512xf32>
    tpu.vector_store %arg2[%c0_12, %c0_13], %63 {strides = array<i32>} : memref<4x1024xf32, #tpu.memory_space<vmem>>, vector<4x512xf32>,
    %c0_14 = arith.constant 0 : index
    %c512 = arith.constant 512 : index
    %67 = vector.load %arg2[%c0_14, %c512] : memref<4x1024xf32, #tpu.memory_space<vmem>>, vector<4x512xf32>
    tpu.vector_store %arg2[%c0_14, %c512], %65 {strides = array<i32>} : memref<4x1024xf32, #tpu.memory_space<vmem>>, vector<4x512xf32>,
    return
  }
  func.func @transform_0(%arg0: i32, %arg1: memref<1xi32, #tpu.memory_space<smem>>) -> (i32, i32) {
    %c0_i32 = arith.constant 0 : i32
    %c0_i32_0 = arith.constant 0 : i32
    return %arg0, %c0_i32 : i32, i32
  }
}

</mosaic_0001>

<llo_original>
// kernel: tpu_custom_call.1
$region0: #{tpu_custom_call.1}
  #allocation0 [shape = 'u32[]', space=smem, size = 0x4, offset = 0x4, fixed_abs, tag = 'smem constant byte address 0x4 - core index']
  #allocation1 [shape = 'u32[72,128]{1,0:T(1,128)}', space=vmem, size = 0x9000, scoped, tag = 'internal scratch']
  #allocation2 [shape = 's32[1]{0}', space=sflag, size = 0x4, scoped, tag = 'scoped memory for tpu_custom_call.1']
  #allocation3 [shape = 's32[1]{0:T(128)S(6)}', space=smem, size = 0x200, scoped, tag = 'prefetched SMEM operand 0']
  %s0 = inlined_call_operand.<no memory space> [shape: s32[1], index: 0, kind: input, shape index: {}]
  %s1 = inlined_call_operand.hbm [shape: f32[4,1024], index: 1, kind: output, shape index: {}]
  %s2 = sld [smem:[#allocation0]]
  $region10: #{tpu_custom_call.1} parent=0
    _
  %s4 = ssub.s32 1, %s2
  %s5 = scalar_select 0, %s4, %s2
  %6 = sst [smem:[#allocation3]] %s0
  $region1: #{tpu_custom_call.1} parent=0
    #allocation4 [shape = 'u8[16384]{0}', space=vmem, size = 0x4000, scoped, tag = 'output window, operand 0, single buffered']
    #allocation5 [shape = 's32[1]{0}', space=sflag, size = 0x4, scoped, tag = 'scoped memory for tpu_custom_call.1']
    %7 = vsyncpa [#allocation5], 0
    %v8 = vlaneseq
    %v9 = vshrl.u32 %v8, 7
    %v10 = vlaneseq
    %v11 = vand.u32 %v10, 127
    %v12 = vadd.s32 %v11, 128
    %v13 = vadd.s32 %v11, 256
    %v14 = vadd.s32 %v11, 384
    %s15 = smul.u32 0, 4
    %v16 = vstv %s15
    %v17 = vadd.s32 %v16, %v9
    %v18 = vmul.u32 %v17, 512
    %v19 = vadd.s32 %v18, %v11
    %v20 = vadd.s32 %v18, %v12
    %v21 = vadd.s32 %v18, %v13
    %v22 = vadd.s32 %v18, %v14
    %s23 = sld [smem:[#allocation3]]
    %v24 = vstv %s23
    %v25 = vxor.u32 %v19, %v24
    %v26 = vxor.u32 %v20, %v24
    %v27 = vxor.u32 %v21, %v24
    %v28 = vxor.u32 %v22, %v24
    %v29 = vshll.u32 %v25, 1
    %v30 = vshll.u32 %v26, 1
    %v31 = vshll.u32 %v27, 1
    %v32 = vshll.u32 %v28, 1
    %v33 = vshrl.u32 %v29, 16
    %v34 = vshrl.u32 %v30, 16
    %v35 = vshrl.u32 %v31, 16
    %v36 = vshrl.u32 %v32, 16
    %v37 = vxor.u32 %v29, %v33
    %v38 = vxor.u32 %v30, %v34
    %v39 = vxor.u32 %v31, %v35
    %v40 = vxor.u32 %v32, %v36
    %v41 = vmul.u32 %v37, 2146121005
    %v42 = vmul.u32 %v38, 2146121005
    %v43 = vmul.u32 %v39, 2146121005
    %v44 = vmul.u32 %v40, 2146121005
    %v45 = vshrl.u32 %v41, 15
    %v46 = vshrl.u32 %v42, 15
    %v47 = vshrl.u32 %v43, 15
    %v48 = vshrl.u32 %v44, 15
    %v49 = vxor.u32 %v41, %v45
    %v50 = vxor.u32 %v42, %v46
    %v51 = vxor.u32 %v43, %v47
    %v52 = vxor.u32 %v44, %v48
    %v53 = vmul.u32 %v49, 2221713035
    %v54 = vmul.u32 %v50, 2221713035
    %v55 = vmul.u32 %v51, 2221713035
    %v56 = vmul.u32 %v52, 2221713035
    %v57 = vshrl.u32 %v53, 16
    %v58 = vshrl.u32 %v54, 16
    %v59 = vshrl.u32 %v55, 16
    %v60 = vshrl.u32 %v56, 16
    %v61 = vxor.u32 %v53, %v57
    %v62 = vxor.u32 %v54, %v58
    %v63 = vxor.u32 %v55, %v59
    %v64 = vxor.u32 %v56, %v60
    %v65 = vadd.s32 %v29, 1
    %v66 = vadd.s32 %v30, 1
    %v67 = vadd.s32 %v31, 1
    %v68 = vadd.s32 %v32, 1
    %v69 = vshrl.u32 %v65, 16
    %v70 = vshrl.u32 %v66, 16
    %v71 = vshrl.u32 %v67, 16
    %v72 = vshrl.u32 %v68, 16
    %v73 = vxor.u32 %v65, %v69
    %v74 = vxor.u32 %v66, %v70
    %v75 = vxor.u32 %v67, %v71
    %v76 = vxor.u32 %v68, %v72
    %v77 = vmul.u32 %v73, 2146121005
    %v78 = vmul.u32 %v74, 2146121005
    %v79 = vmul.u32 %v75, 2146121005
    %v80 = vmul.u32 %v76, 2146121005
    %v81 = vshrl.u32 %v77, 15
    %v82 = vshrl.u32 %v78, 15
    %v83 = vshrl.u32 %v79, 15
    %v84 = vshrl.u32 %v80, 15
    %v85 = vxor.u32 %v77, %v81
    %v86 = vxor.u32 %v78, %v82
    %v87 = vxor.u32 %v79, %v83
    %v88 = vxor.u32 %v80, %v84
    %v89 = vmul.u32 %v85, 2221713035
    %v90 = vmul.u32 %v86, 2221713035
    %v91 = vmul.u32 %v87, 2221713035
    %v92 = vmul.u32 %v88, 2221713035
    %v93 = vshrl.u32 %v89, 16
    %v94 = vshrl.u32 %v90, 16
    %v95 = vshrl.u32 %v91, 16
    %v96 = vshrl.u32 %v92, 16
    %v97 = vxor.u32 %v89, %v93
    %v98 = vxor.u32 %v90, %v94
    %v99 = vxor.u32 %v91, %v95
    %v100 = vxor.u32 %v92, %v96
    %v101 = vshrl.u32 %v61, 9
    %v102 = vshrl.u32 %v62, 9
    %v103 = vshrl.u32 %v63, 9
    %v104 = vshrl.u32 %v64, 9
    %v105 = vor.u32 %v101, 1065353216
    %v106 = vor.u32 %v102, 1065353216
    %v107 = vor.u32 %v103, 1065353216
    %v108 = vor.u32 %v104, 1065353216
    %v113 = vshrl.u32 %v97, 9
    %v114 = vshrl.u32 %v98, 9
    %v115 = vshrl.u32 %v99, 9
    %v116 = vshrl.u32 %v100, 9
    %v117 = vor.u32 %v113, 1065353216
    %v118 = vor.u32 %v114, 1065353216
    %v119 = vor.u32 %v115, 1065353216
    %v120 = vor.u32 %v116, 1065353216
    %v125 = vsub.f32 %v117, 1.0
    %v126 = vsub.f32 %v118, 1.0
    %v127 = vsub.f32 %v119, 1.0
    %v128 = vsub.f32 %v120, 1.0
    %v129 = vsub.f32 2.0, %v105
    %v130 = vsub.f32 2.0, %v106
    %v131 = vsub.f32 2.0, %v107
    %v132 = vsub.f32 2.0, %v108
    %v133 = vlog2.pop %v129
    %v134 = vmul.f32 %v133, 0.6931472
    %v135 = vlog2.pop %v130
    %v136 = vmul.f32 %v135, 0.6931472
    %v137 = vlog2.pop %v131
    %v138 = vmul.f32 %v137, 0.6931472
    %v139 = vlog2.pop %v132
    %v140 = vmul.f32 %v139, 0.6931472
    %v141 = vmul.f32 %v134, -2.0
    %v142 = vmul.f32 %v136, -2.0
    %v143 = vmul.f32 %v138, -2.0
    %v144 = vmul.f32 %v140, -2.0
    %v145 = vrsqrt.pop %v141
    %v146 = vmul.f32 %v145, %v141
    %v147 = vmul.f32 %v146, %v145
    %v148 = vmul.f32 0.5, %v147
    %v149 = vsub.f32 1.5, %v148
    %v150 = vmul.f32 %v145, %v149
    %v151 = vmul.f32 %v141, %v150
    %vm152 = vcmp.eq.f32.partialorder %v141, inf
    %v153 = vsel %vm152, %v141, %v151
    %vm154 = vcmp.eq.f32.partialorder %v141, 0.0
    %v155 = vand.u32 %v141, 2147483648
    %v156 = vsel %vm154, %v155, %v153
    %v157 = vrsqrt.pop %v142
    %v158 = vmul.f32 %v157, %v142
    %v159 = vmul.f32 %v158, %v157
    %v160 = vmul.f32 0.5, %v159
    %v161 = vsub.f32 1.5, %v160
    %v162 = vmul.f32 %v157, %v161
    %v163 = vmul.f32 %v142, %v162
    %vm164 = vcmp.eq.f32.partialorder %v142, inf
    %v165 = vsel %vm164, %v142, %v163
    %vm166 = vcmp.eq.f32.partialorder %v142, 0.0
    %v167 = vand.u32 %v142, 2147483648
    %v168 = vsel %vm166, %v167, %v165
    %v169 = vrsqrt.pop %v143
    %v170 = vmul.f32 %v169, %v143
    %v171 = vmul.f32 %v170, %v169
    %v172 = vmul.f32 0.5, %v171
    %v173 = vsub.f32 1.5, %v172
    %v174 = vmul.f32 %v169, %v173
    %v175 = vmul.f32 %v143, %v174
    %vm176 = vcmp.eq.f32.partialorder %v143, inf
    %v177 = vsel %vm176, %v143, %v175
    %vm178 = vcmp.eq.f32.partialorder %v143, 0.0
    %v179 = vand.u32 %v143, 2147483648
    %v180 = vsel %vm178, %v179, %v177
    %v181 = vrsqrt.pop %v144
    %v182 = vmul.f32 %v181, %v144
    %v183 = vmul.f32 %v182, %v181
    %v184 = vmul.f32 0.5, %v183
    %v185 = vsub.f32 1.5, %v184
    %v186 = vmul.f32 %v181, %v185
    %v187 = vmul.f32 %v144, %v186
    %vm188 = vcmp.eq.f32.partialorder %v144, inf
    %v189 = vsel %vm188, %v144, %v187
    %vm190 = vcmp.eq.f32.partialorder %v144, 0.0
    %v191 = vand.u32 %v144, 2147483648
    %v192 = vsel %vm190, %v191, %v189
    %v193 = vmul.f32 %v125, 6.2831855
    %v194 = vmul.f32 %v126, 6.2831855
    %v195 = vmul.f32 %v127, 6.2831855
    %v196 = vmul.f32 %v128, 6.2831855
    %v197 = vand.u32 2147483647, %v193
    %vm198 = vcmp.le.f32.partialorder %v197, 0.7853982
    %vm199 = vcmp.lt.s32.totalorder %v193, 0
    %v200 = vand.u32 %v193, 2139095040
    %v201 = vshrl.u32 %v200, 23
    %v202 = vsub.s32 %v201, 127
    %v203 = vand.u32 2147483647, %v193
    %v204 = vand.u32 %v203, 8388607
    %v205 = vor.u32 %v204, 8388608
    %v206 = vsub.s32 0, %v205
    %v207 = vadd.s32 %v202, 1
    %vm208 = vcmp.gt.s32.totalorder %v207, 0
    %v209 = vsel %vm208, %v207, 0
    %v210 = vshrl.u32 %v209, 5
    %v211 = vand.u32 %v209, 31
    %v212 = vsub.s32 32, %v211
    %v213 = vshrl.u32 683565275, %v212
    %v214 = vshll.u32 683565275, %v211
    %v215 = vshrl.u32 2475754826, %v212
    %v216 = vor.u32 %v214, %v215
    %v217 = vshll.u32 2475754826, %v211
    %v218 = vshrl.u32 2131351028, %v212
    %v219 = vor.u32 %v217, %v218
    %v220 = vshll.u32 2131351028, %v211
    %v221 = vshrl.u32 2102212464, %v212
    %v222 = vor.u32 %v220, %v221
    %v223 = vshll.u32 2102212464, %v211
    %v224 = vshrl.u32 920167782, %v212
    %v225 = vor.u32 %v223, %v224
    %v226 = vshll.u32 920167782, %v211
    %v227 = vshrl.u32 1326507024, %v212
    %v228 = vor.u32 %v226, %v227
    %vm229 = vcmp.lt.s32.totalorder %v210, 1
    %vm230 = vcmp.lt.s32.totalorder %v210, 2
    %vm231 = vcmp.lt.s32.totalorder %v210, 3
    %vm232 = vcmp.lt.s32.totalorder %v210, 4
    %v233 = vsel %vm229, %v213, %v216
    %v234 = vsel %vm232, %v222, 2102212464
    %v235 = vsel %vm231, %v219, %v234
    %v236 = vsel %vm230, %v233, %v235
    %v237 = vsel %vm229, %v216, %v219
    %v238 = vsel %vm232, %v225, 920167782
    %v239 = vsel %vm231, %v222, %v238
    %v240 = vsel %vm230, %v237, %v239
    %v241 = vsel %vm229, %v219, %v222
    %v242 = vsel %vm232, %v228, 1326507024
    %v243 = vsel %vm231, %v225, %v242
    %v244 = vsel %vm230, %v241, %v243
    %v245 = vshll.u32 %v205, 8
    %v246 = vand.u32 %v245, 65535
    %v247 = vshrl.u32 %v245, 16
    %v248 = vand.u32 %v244, 65535
    %v249 = vshrl.u32 %v244, 16
    %v250 = vmul.u32 %v246, %v248
    %v251 = vmul.u32 %v246, %v249
    %v252 = vmul.u32 %v247, %v248
    %v253 = vmul.u32 %v247, %v249
    %v254 = vshll.u32 %v251, 16
    %v255 = vshrl.u32 %v251, 16
    %v256 = vshll.u32 %v252, 16
    %v257 = vshrl.u32 %v252, 16
    %vm258 = vc.u32 %v250, %v254
    %v259 = vsel %vm258, 1, 0
    %v260 = vadd.s32 %v250, %v254
    %v261 = vadd.s32 %v253, %v259
    %vm262 = vc.u32 %v260, %v256
    %v263 = vsel %vm262, 1, 0
    %v264 = vadd.s32 %v260, %v256
    %v265 = vadd.s32 %v261, %v263
    %v266 = vadd.s32 %v265, %v255
    %v267 = vadd.s32 %v266, %v257
    %v268 = vand.u32 %v245, 65535
    %v269 = vshrl.u32 %v245, 16
    %v270 = vand.u32 %v240, 65535
    %v271 = vshrl.u32 %v240, 16
    %v272 = vmul.u32 %v268, %v270
    %v273 = vmul.u32 %v268, %v271
    %v274 = vmul.u32 %v269, %v270
    %v275 = vmul.u32 %v269, %v271
    %v276 = vshll.u32 %v273, 16
    %v277 = vshrl.u32 %v273, 16
    %v278 = vshll.u32 %v274, 16
    %v279 = vshrl.u32 %v274, 16
    %vm280 = vc.u32 %v272, %v276
    %v281 = vsel %vm280, 1, 0
    %v282 = vadd.s32 %v272, %v276
    %v283 = vadd.s32 %v275, %v281
    %vm284 = vc.u32 %v282, %v278
    %v285 = vsel %vm284, 1, 0
    %v286 = vadd.s32 %v282, %v278
    %v287 = vadd.s32 %v283, %v285
    %v288 = vadd.s32 %v287, %v277
    %v289 = vadd.s32 %v288, %v279
    %v290 = vmul.u32 %v245, %v236
    %v291 = vadd.s32 %v267, %v286
    %vm292 = vc.u32 %v267, %v286
    %v293 = vadd.s32 %v289, 1
    %v294 = vsel %vm292, %v293, %v289
    %v295 = vadd.s32 %v290, %v294
    %v296 = vadd.s32 %v295, 536870912
    %v297 = vshrl.u32 %v296, 30
    %v298 = vshll.u32 %v297, 30
    %v299 = vsub.s32 %v295, %v298
    %vm300 = vcmp.lt.s32.totalorder %v299, 0
    %v301 = vsub.s32 0, %v299
    %v302 = vsel %vm300, %v301, %v299
    %v303 = vclz %v302
    %v304 = vsub.s32 %v303, 2
    %vm305 = vcmp.gt.s32.totalorder 0, %v304
    %v306 = vsel %vm305, 0, %v304
    %v307 = vsub.s32 32, %v306
    %v308 = vshll.u32 %v299, %v306
    %v309 = vshrl.u32 %v291, %v307
    %v310 = vor.u32 %v308, %v309
    %v311 = vsub.s32 4294967266, %v306
    %v312 = vadd.s32 %v311, 127
    %v313 = vshll.u32 %v312, 23
    %v314 = vor.u32 4788187, %v313
    %v315 = vand.u32 2147483647, %v314
    %v317 = vcvt.s32.f32 %v310
    %v318 = vmul.f32 %v317, %v315
    %v319 = vxor.u32 %v318, 2147483648
    %v320 = vsel %vm199, %v319, %v318
    %v321 = vsub.s32 4, %v297
    %v322 = vsel %vm199, %v321, %v297
    %v323 = vsel %vm198, %v193, %v320
    %v324 = vsel %vm198, 0, %v322
    %v325 = vmul.f32 %v323, %v323
    %v326 = vmul.f32 %v325, -0.001358992
    %v327 = vadd.f32 %v326, 0.041655596
    %v328 = vmul.f32 %v325, %v327
    %v329 = vadd.f32 %v328, -0.4999988
    %v330 = vmul.f32 %v325, %v329
    %v331 = vadd.f32 1.0, %v330
    %v332 = vmul.f32 %v323, %v323
    %v333 = vmul.f32 %v332, -0.00019511016
    %v334 = vadd.f32 %v333, 0.008332121
    %v335 = vmul.f32 %v332, %v334
    %v336 = vadd.f32 %v335, -0.16666654
    %v337 = vmul.f32 %v332, %v336
    %v338 = vadd.f32 %v337, 1.0
    %v339 = vmul.f32 %v338, %v323
    %vm340 = vweird.f32 %v193
    %v341 = vand.u32 %v324, 3
    %vm342 = vcmp.lt.s32.totalorder %v341, 2
    %vm343 = vcmp.eq.s32.totalorder %v341, 0
    %v344 = vxor.u32 %v339, 2147483648
    %v345 = vsel %vm343, %v331, %v344
    %vm346 = vcmp.eq.s32.totalorder %v341, 2
    %v347 = vxor.u32 %v331, 2147483648
    %v348 = vsel %vm346, %v347, %v339
    %v349 = vsel %vm342, %v345, %v348
    %v350 = vsel %vm340, nan, %v349
    %v351 = vand.u32 2147483647, %v194
    %vm352 = vcmp.le.f32.partialorder %v351, 0.7853982
    %vm353 = vcmp.lt.s32.totalorder %v194, 0
    %v354 = vand.u32 %v194, 2139095040
    %v355 = vshrl.u32 %v354, 23
    %v356 = vsub.s32 %v355, 127
    %v357 = vand.u32 2147483647, %v194
    %v358 = vand.u32 %v357, 8388607
    %v359 = vor.u32 %v358, 8388608
    %v360 = vsub.s32 0, %v359
    %v361 = vadd.s32 %v356, 1
    %vm362 = vcmp.gt.s32.totalorder %v361, 0
    %v363 = vsel %vm362, %v361, 0
    %v364 = vshrl.u32 %v363, 5
    %v365 = vand.u32 %v363, 31
    %v366 = vsub.s32 32, %v365
    %v367 = vshrl.u32 683565275, %v366
    %v368 = vshll.u32 683565275, %v365
    %v369 = vshrl.u32 2475754826, %v366
    %v370 = vor.u32 %v368, %v369
    %v371 = vshll.u32 2475754826, %v365
    %v372 = vshrl.u32 2131351028, %v366
    %v373 = vor.u32 %v371, %v372
    %v374 = vshll.u32 2131351028, %v365
    %v375 = vshrl.u32 2102212464, %v366
    %v376 = vor.u32 %v374, %v375
    %v377 = vshll.u32 2102212464, %v365
    %v378 = vshrl.u32 920167782, %v366
    %v379 = vor.u32 %v377, %v378
    %v380 = vshll.u32 920167782, %v365
    %v381 = vshrl.u32 1326507024, %v366
    %v382 = vor.u32 %v380, %v381
    %vm383 = vcmp.lt.s32.totalorder %v364, 1
    %vm384 = vcmp.lt.s32.totalorder %v364, 2
    %vm385 = vcmp.lt.s32.totalorder %v364, 3
    %vm386 = vcmp.lt.s32.totalorder %v364, 4
    %v387 = vsel %vm383, %v367, %v370
    %v388 = vsel %vm386, %v376, 2102212464
    %v389 = vsel %vm385, %v373, %v388
    %v390 = vsel %vm384, %v387, %v389
    %v391 = vsel %vm383, %v370, %v373
    %v392 = vsel %vm386, %v379, 920167782
    %v393 = vsel %vm385, %v376, %v392
    %v394 = vsel %vm384, %v391, %v393
    %v395 = vsel %vm383, %v373, %v376
    %v396 = vsel %vm386, %v382, 1326507024
    %v397 = vsel %vm385, %v379, %v396
    %v398 = vsel %vm384, %v395, %v397
    %v399 = vshll.u32 %v359, 8
    %v400 = vand.u32 %v399, 65535
    %v401 = vshrl.u32 %v399, 16
    %v402 = vand.u32 %v398, 65535
    %v403 = vshrl.u32 %v398, 16
    %v404 = vmul.u32 %v400, %v402
    %v405 = vmul.u32 %v400, %v403
    %v406 = vmul.u32 %v401, %v402
    %v407 = vmul.u32 %v401, %v403
    %v408 = vshll.u32 %v405, 16
    %v409 = vshrl.u32 %v405, 16
    %v410 = vshll.u32 %v406, 16
    %v411 = vshrl.u32 %v406, 16
    %vm412 = vc.u32 %v404, %v408
    %v413 = vsel %vm412, 1, 0
    %v414 = vadd.s32 %v404, %v408
    %v415 = vadd.s32 %v407, %v413
    %vm416 = vc.u32 %v414, %v410
    %v417 = vsel %vm416, 1, 0
    %v418 = vadd.s32 %v414, %v410
    %v419 = vadd.s32 %v415, %v417
    %v420 = vadd.s32 %v419, %v409
    %v421 = vadd.s32 %v420, %v411
    %v422 = vand.u32 %v399, 65535
    %v423 = vshrl.u32 %v399, 16
    %v424 = vand.u32 %v394, 65535
    %v425 = vshrl.u32 %v394, 16
    %v426 = vmul.u32 %v422, %v424
    %v427 = vmul.u32 %v422, %v425
    %v428 = vmul.u32 %v423, %v424
    %v429 = vmul.u32 %v423, %v425
    %v430 = vshll.u32 %v427, 16
    %v431 = vshrl.u32 %v427, 16
    %v432 = vshll.u32 %v428, 16
    %v433 = vshrl.u32 %v428, 16
    %vm434 = vc.u32 %v426, %v430
    %v435 = vsel %vm434, 1, 0
    %v436 = vadd.s32 %v426, %v430
    %v437 = vadd.s32 %v429, %v435
    %vm438 = vc.u32 %v436, %v432
    %v439 = vsel %vm438, 1, 0
    %v440 = vadd.s32 %v436, %v432
    %v441 = vadd.s32 %v437, %v439
    %v442 = vadd.s32 %v441, %v431
    %v443 = vadd.s32 %v442, %v433
    %v444 = vmul.u32 %v399, %v390
    %v445 = vadd.s32 %v421, %v440
    %vm446 = vc.u32 %v421, %v440
    %v447 = vadd.s32 %v443, 1
    %v448 = vsel %vm446, %v447, %v443
    %v449 = vadd.s32 %v444, %v448
    %v450 = vadd.s32 %v449, 536870912
    %v451 = vshrl.u32 %v450, 30
    %v452 = vshll.u32 %v451, 30
    %v453 = vsub.s32 %v449, %v452
    %vm454 = vcmp.lt.s32.totalorder %v453, 0
    %v455 = vsub.s32 0, %v453
    %v456 = vsel %vm454, %v455, %v453
    %v457 = vclz %v456
    %v458 = vsub.s32 %v457, 2
    %vm459 = vcmp.gt.s32.totalorder 0, %v458
    %v460 = vsel %vm459, 0, %v458
    %v461 = vsub.s32 32, %v460
    %v462 = vshll.u32 %v453, %v460
    %v463 = vshrl.u32 %v445, %v461
    %v464 = vor.u32 %v462, %v463
    %v465 = vsub.s32 4294967266, %v460
    %v466 = vadd.s32 %v465, 127
    %v467 = vshll.u32 %v466, 23
    %v468 = vor.u32 4788187, %v467
    %v469 = vand.u32 2147483647, %v468
    %v471 = vcvt.s32.f32 %v464
    %v472 = vmul.f32 %v471, %v469
    %v473 = vxor.u32 %v472, 2147483648
    %v474 = vsel %vm353, %v473, %v472
    %v475 = vsub.s32 4, %v451
    %v476 = vsel %vm353, %v475, %v451
    %v477 = vsel %vm352, %v194, %v474
    %v478 = vsel %vm352, 0, %v476
    %v479 = vmul.f32 %v477, %v477
    %v480 = vmul.f32 %v479, -0.001358992
    %v481 = vadd.f32 %v480, 0.041655596
    %v482 = vmul.f32 %v479, %v481
    %v483 = vadd.f32 %v482, -0.4999988
    %v484 = vmul.f32 %v479, %v483
    %v485 = vadd.f32 1.0, %v484
    %v486 = vmul.f32 %v477, %v477
    %v487 = vmul.f32 %v486, -0.00019511016
    %v488 = vadd.f32 %v487, 0.008332121
    %v489 = vmul.f32 %v486, %v488
    %v490 = vadd.f32 %v489, -0.16666654
    %v491 = vmul.f32 %v486, %v490
    %v492 = vadd.f32 %v491, 1.0
    %v493 = vmul.f32 %v492, %v477
    %vm494 = vweird.f32 %v194
    %v495 = vand.u32 %v478, 3
    %vm496 = vcmp.lt.s32.totalorder %v495, 2
    %vm497 = vcmp.eq.s32.totalorder %v495, 0
    %v498 = vxor.u32 %v493, 2147483648
    %v499 = vsel %vm497, %v485, %v498
    %vm500 = vcmp.eq.s32.totalorder %v495, 2
    %v501 = vxor.u32 %v485, 2147483648
    %v502 = vsel %vm500, %v501, %v493
    %v503 = vsel %vm496, %v499, %v502
    %v504 = vsel %vm494, nan, %v503
    %v505 = vand.u32 2147483647, %v195
    %vm506 = vcmp.le.f32.partialorder %v505, 0.7853982
    %vm507 = vcmp.lt.s32.totalorder %v195, 0
    %v508 = vand.u32 %v195, 2139095040
    %v509 = vshrl.u32 %v508, 23
    %v510 = vsub.s32 %v509, 127
    %v511 = vand.u32 2147483647, %v195
    %v512 = vand.u32 %v511, 8388607
    %v513 = vor.u32 %v512, 8388608
    %v514 = vsub.s32 0, %v513
    %v515 = vadd.s32 %v510, 1
    %vm516 = vcmp.gt.s32.totalorder %v515, 0
    %v517 = vsel %vm516, %v515, 0
    %v518 = vshrl.u32 %v517, 5
    %v519 = vand.u32 %v517, 31
    %v520 = vsub.s32 32, %v519
    %v521 = vshrl.u32 683565275, %v520
    %v522 = vshll.u32 683565275, %v519
    %v523 = vshrl.u32 2475754826, %v520
    %v524 = vor.u32 %v522, %v523
    %v525 = vshll.u32 2475754826, %v519
    %v526 = vshrl.u32 2131351028, %v520
    %v527 = vor.u32 %v525, %v526
    %v528 = vshll.u32 2131351028, %v519
    %v529 = vshrl.u32 2102212464, %v520
    %v530 = vor.u32 %v528, %v529
    %v531 = vshll.u32 2102212464, %v519
    %v532 = vshrl.u32 920167782, %v520
    %v533 = vor.u32 %v531, %v532
    %v534 = vshll.u32 920167782, %v519
    %v535 = vshrl.u32 1326507024, %v520
    %v536 = vor.u32 %v534, %v535
    %vm537 = vcmp.lt.s32.totalorder %v518, 1
    %vm538 = vcmp.lt.s32.totalorder %v518, 2
    %vm539 = vcmp.lt.s32.totalorder %v518, 3
    %vm540 = vcmp.lt.s32.totalorder %v518, 4
    %v541 = vsel %vm537, %v521, %v524
    %v542 = vsel %vm540, %v530, 2102212464
    %v543 = vsel %vm539, %v527, %v542
    %v544 = vsel %vm538, %v541, %v543
    %v545 = vsel %vm537, %v524, %v527
    %v546 = vsel %vm540, %v533, 920167782
    %v547 = vsel %vm539, %v530, %v546
    %v548 = vsel %vm538, %v545, %v547
    %v549 = vsel %vm537, %v527, %v530
    %v550 = vsel %vm540, %v536, 1326507024
    %v551 = vsel %vm539, %v533, %v550
    %v552 = vsel %vm538, %v549, %v551
    %v553 = vshll.u32 %v513, 8
    %v554 = vand.u32 %v553, 65535
    %v555 = vshrl.u32 %v553, 16
    %v556 = vand.u32 %v552, 65535
    %v557 = vshrl.u32 %v552, 16
    %v558 = vmul.u32 %v554, %v556
    %v559 = vmul.u32 %v554, %v557
    %v560 = vmul.u32 %v555, %v556
    %v561 = vmul.u32 %v555, %v557
    %v562 = vshll.u32 %v559, 16
    %v563 = vshrl.u32 %v559, 16
    %v564 = vshll.u32 %v560, 16
    %v565 = vshrl.u32 %v560, 16
    %vm566 = vc.u32 %v558, %v562
    %v567 = vsel %vm566, 1, 0
    %v568 = vadd.s32 %v558, %v562
    %v569 = vadd.s32 %v561, %v567
    %vm570 = vc.u32 %v568, %v564
    %v571 = vsel %vm570, 1, 0
    %v572 = vadd.s32 %v568, %v564
    %v573 = vadd.s32 %v569, %v571
    %v574 = vadd.s32 %v573, %v563
    %v575 = vadd.s32 %v574, %v565
    %v576 = vand.u32 %v553, 65535
    %v577 = vshrl.u32 %v553, 16
    %v578 = vand.u32 %v548, 65535
    %v579 = vshrl.u32 %v548, 16
    %v580 = vmul.u32 %v576, %v578
    %v581 = vmul.u32 %v576, %v579
    %v582 = vmul.u32 %v577, %v578
    %v583 = vmul.u32 %v577, %v579
    %v584 = vshll.u32 %v581, 16
    %v585 = vshrl.u32 %v581, 16
    %v586 = vshll.u32 %v582, 16
    %v587 = vshrl.u32 %v582, 16
    %vm588 = vc.u32 %v580, %v584
    %v589 = vsel %vm588, 1, 0
    %v590 = vadd.s32 %v580, %v584
    %v591 = vadd.s32 %v583, %v589
    %vm592 = vc.u32 %v590, %v586
    %v593 = vsel %vm592, 1, 0
    %v594 = vadd.s32 %v590, %v586
    %v595 = vadd.s32 %v591, %v593
    %v596 = vadd.s32 %v595, %v585
    %v597 = vadd.s32 %v596, %v587
    %v598 = vmul.u32 %v553, %v544
    %v599 = vadd.s32 %v575, %v594
    %vm600 = vc.u32 %v575, %v594
    %v601 = vadd.s32 %v597, 1
    %v602 = vsel %vm600, %v601, %v597
    %v603 = vadd.s32 %v598, %v602
    %v604 = vadd.s32 %v603, 536870912
    %v605 = vshrl.u32 %v604, 30
    %v606 = vshll.u32 %v605, 30
    %v607 = vsub.s32 %v603, %v606
    %vm608 = vcmp.lt.s32.totalorder %v607, 0
    %v609 = vsub.s32 0, %v607
    %v610 = vsel %vm608, %v609, %v607
    %v611 = vclz %v610
    %v612 = vsub.s32 %v611, 2
    %vm613 = vcmp.gt.s32.totalorder 0, %v612
    %v614 = vsel %vm613, 0, %v612
    %v615 = vsub.s32 32, %v614
    %v616 = vshll.u32 %v607, %v614
    %v617 = vshrl.u32 %v599, %v615
    %v618 = vor.u32 %v616, %v617
    %v619 = vsub.s32 4294967266, %v614
    %v620 = vadd.s32 %v619, 127
    %v621 = vshll.u32 %v620, 23
    %v622 = vor.u32 4788187, %v621
    %v623 = vand.u32 2147483647, %v622
    %v625 = vcvt.s32.f32 %v618
    %v626 = vmul.f32 %v625, %v623
    %v627 = vxor.u32 %v626, 2147483648
    %v628 = vsel %vm507, %v627, %v626
    %v629 = vsub.s32 4, %v605
    %v630 = vsel %vm507, %v629, %v605
    %v631 = vsel %vm506, %v195, %v628
    %v632 = vsel %vm506, 0, %v630
    %v633 = vmul.f32 %v631, %v631
    %v634 = vmul.f32 %v633, -0.001358992
    %v635 = vadd.f32 %v634, 0.041655596
    %v636 = vmul.f32 %v633, %v635
    %v637 = vadd.f32 %v636, -0.4999988
    %v638 = vmul.f32 %v633, %v637
    %v639 = vadd.f32 1.0, %v638
    %v640 = vmul.f32 %v631, %v631
    %v641 = vmul.f32 %v640, -0.00019511016
    %v642 = vadd.f32 %v641, 0.008332121
    %v643 = vmul.f32 %v640, %v642
    %v644 = vadd.f32 %v643, -0.16666654
    %v645 = vmul.f32 %v640, %v644
    %v646 = vadd.f32 %v645, 1.0
    %v647 = vmul.f32 %v646, %v631
    %vm648 = vweird.f32 %v195
    %v649 = vand.u32 %v632, 3
    %vm650 = vcmp.lt.s32.totalorder %v649, 2
    %vm651 = vcmp.eq.s32.totalorder %v649, 0
    %v652 = vxor.u32 %v647, 2147483648
    %v653 = vsel %vm651, %v639, %v652
    %vm654 = vcmp.eq.s32.totalorder %v649, 2
    %v655 = vxor.u32 %v639, 2147483648
    %v656 = vsel %vm654, %v655, %v647
    %v657 = vsel %vm650, %v653, %v656
    %v658 = vsel %vm648, nan, %v657
    %v659 = vand.u32 2147483647, %v196
    %vm660 = vcmp.le.f32.partialorder %v659, 0.7853982
    %vm661 = vcmp.lt.s32.totalorder %v196, 0
    %v662 = vand.u32 %v196, 2139095040
    %v663 = vshrl.u32 %v662, 23
    %v664 = vsub.s32 %v663, 127
    %v665 = vand.u32 2147483647, %v196
    %v666 = vand.u32 %v665, 8388607
    %v667 = vor.u32 %v666, 8388608
    %v668 = vsub.s32 0, %v667
    %v669 = vadd.s32 %v664, 1
    %vm670 = vcmp.gt.s32.totalorder %v669, 0
    %v671 = vsel %vm670, %v669, 0
    %v672 = vshrl.u32 %v671, 5
    %v673 = vand.u32 %v671, 31
    %v674 = vsub.s32 32, %v673
    %v675 = vshrl.u32 683565275, %v674
    %v676 = vshll.u32 683565275, %v673
    %v677 = vshrl.u32 2475754826, %v674
    %v678 = vor.u32 %v676, %v677
    %v679 = vshll.u32 2475754826, %v673
    %v680 = vshrl.u32 2131351028, %v674
    %v681 = vor.u32 %v679, %v680
    %v682 = vshll.u32 2131351028, %v673
    %v683 = vshrl.u32 2102212464, %v674
    %v684 = vor.u32 %v682, %v683
    %v685 = vshll.u32 2102212464, %v673
    %v686 = vshrl.u32 920167782, %v674
    %v687 = vor.u32 %v685, %v686
    %v688 = vshll.u32 920167782, %v673
    %v689 = vshrl.u32 1326507024, %v674
    %v690 = vor.u32 %v688, %v689
    %vm691 = vcmp.lt.s32.totalorder %v672, 1
    %vm692 = vcmp.lt.s32.totalorder %v672, 2
    %vm693 = vcmp.lt.s32.totalorder %v672, 3
    %vm694 = vcmp.lt.s32.totalorder %v672, 4
    %v695 = vsel %vm691, %v675, %v678
    %v696 = vsel %vm694, %v684, 2102212464
    %v697 = vsel %vm693, %v681, %v696
    %v698 = vsel %vm692, %v695, %v697
    %v699 = vsel %vm691, %v678, %v681
    %v700 = vsel %vm694, %v687, 920167782
    %v701 = vsel %vm693, %v684, %v700
    %v702 = vsel %vm692, %v699, %v701
    %v703 = vsel %vm691, %v681, %v684
    %v704 = vsel %vm694, %v690, 1326507024
    %v705 = vsel %vm693, %v687, %v704
    %v706 = vsel %vm692, %v703, %v705
    %v707 = vshll.u32 %v667, 8
    %v708 = vand.u32 %v707, 65535
    %v709 = vshrl.u32 %v707, 16
    %v710 = vand.u32 %v706, 65535
    %v711 = vshrl.u32 %v706, 16
    %v712 = vmul.u32 %v708, %v710
    %v713 = vmul.u32 %v708, %v711
    %v714 = vmul.u32 %v709, %v710
    %v715 = vmul.u32 %v709, %v711
    %v716 = vshll.u32 %v713, 16
    %v717 = vshrl.u32 %v713, 16
    %v718 = vshll.u32 %v714, 16
    %v719 = vshrl.u32 %v714, 16
    %vm720 = vc.u32 %v712, %v716
    %v721 = vsel %vm720, 1, 0
    %v722 = vadd.s32 %v712, %v716
    %v723 = vadd.s32 %v715, %v721
    %vm724 = vc.u32 %v722, %v718
    %v725 = vsel %vm724, 1, 0
    %v726 = vadd.s32 %v722, %v718
    %v727 = vadd.s32 %v723, %v725
    %v728 = vadd.s32 %v727, %v717
    %v729 = vadd.s32 %v728, %v719
    %v730 = vand.u32 %v707, 65535
    %v731 = vshrl.u32 %v707, 16
    %v732 = vand.u32 %v702, 65535
    %v733 = vshrl.u32 %v702, 16
    %v734 = vmul.u32 %v730, %v732
    %v735 = vmul.u32 %v730, %v733
    %v736 = vmul.u32 %v731, %v732
    %v737 = vmul.u32 %v731, %v733
    %v738 = vshll.u32 %v735, 16
    %v739 = vshrl.u32 %v735, 16
    %v740 = vshll.u32 %v736, 16
    %v741 = vshrl.u32 %v736, 16
    %vm742 = vc.u32 %v734, %v738
    %v743 = vsel %vm742, 1, 0
    %v744 = vadd.s32 %v734, %v738
    %v745 = vadd.s32 %v737, %v743
    %vm746 = vc.u32 %v744, %v740
    %v747 = vsel %vm746, 1, 0
    %v748 = vadd.s32 %v744, %v740
    %v749 = vadd.s32 %v745, %v747
    %v750 = vadd.s32 %v749, %v739
    %v751 = vadd.s32 %v750, %v741
    %v752 = vmul.u32 %v707, %v698
    %v753 = vadd.s32 %v729, %v748
    %vm754 = vc.u32 %v729, %v748
    %v755 = vadd.s32 %v751, 1
    %v756 = vsel %vm754, %v755, %v751
    %v757 = vadd.s32 %v752, %v756
    %v758 = vadd.s32 %v757, 536870912
    %v759 = vshrl.u32 %v758, 30
    %v760 = vshll.u32 %v759, 30
    %v761 = vsub.s32 %v757, %v760
    %vm762 = vcmp.lt.s32.totalorder %v761, 0
    %v763 = vsub.s32 0, %v761
    %v764 = vsel %vm762, %v763, %v761
    %v765 = vclz %v764
    %v766 = vsub.s32 %v765, 2
    %vm767 = vcmp.gt.s32.totalorder 0, %v766
    %v768 = vsel %vm767, 0, %v766
    %v769 = vsub.s32 32, %v768
    %v770 = vshll.u32 %v761, %v768
    %v771 = vshrl.u32 %v753, %v769
    %v772 = vor.u32 %v770, %v771
    %v773 = vsub.s32 4294967266, %v768
    %v774 = vadd.s32 %v773, 127
    %v775 = vshll.u32 %v774, 23
    %v776 = vor.u32 4788187, %v775
    %v777 = vand.u32 2147483647, %v776
    %v779 = vcvt.s32.f32 %v772
    %v780 = vmul.f32 %v779, %v777
    %v781 = vxor.u32 %v780, 2147483648
    %v782 = vsel %vm661, %v781, %v780
    %v783 = vsub.s32 4, %v759
    %v784 = vsel %vm661, %v783, %v759
    %v785 = vsel %vm660, %v196, %v782
    %v786 = vsel %vm660, 0, %v784
    %v787 = vmul.f32 %v785, %v785
    %v788 = vmul.f32 %v787, -0.001358992
    %v789 = vadd.f32 %v788, 0.041655596
    %v790 = vmul.f32 %v787, %v789
    %v791 = vadd.f32 %v790, -0.4999988
    %v792 = vmul.f32 %v787, %v791
    %v793 = vadd.f32 1.0, %v792
    %v794 = vmul.f32 %v785, %v785
    %v795 = vmul.f32 %v794, -0.00019511016
    %v796 = vadd.f32 %v795, 0.008332121
    %v797 = vmul.f32 %v794, %v796
    %v798 = vadd.f32 %v797, -0.16666654
    %v799 = vmul.f32 %v794, %v798
    %v800 = vadd.f32 %v799, 1.0
    %v801 = vmul.f32 %v800, %v785
    %vm802 = vweird.f32 %v196
    %v803 = vand.u32 %v786, 3
    %vm804 = vcmp.lt.s32.totalorder %v803, 2
    %vm805 = vcmp.eq.s32.totalorder %v803, 0
    %v806 = vxor.u32 %v801, 2147483648
    %v807 = vsel %vm805, %v793, %v806
    %vm808 = vcmp.eq.s32.totalorder %v803, 2
    %v809 = vxor.u32 %v793, 2147483648
    %v810 = vsel %vm808, %v809, %v801
    %v811 = vsel %vm804, %v807, %v810
    %v812 = vsel %vm802, nan, %v811
    %v813 = vmul.f32 %v156, %v350
    %v814 = vmul.f32 %v168, %v504
    %v815 = vmul.f32 %v180, %v658
    %v816 = vmul.f32 %v192, %v812
    %v817 = vand.u32 2147483647, %v193
    %vm818 = vcmp.le.f32.partialorder %v817, 0.7853982
    %vm819 = vcmp.lt.s32.totalorder %v193, 0
    %v820 = vand.u32 %v193, 2139095040
    %v821 = vshrl.u32 %v820, 23
    %v822 = vsub.s32 %v821, 127
    %v823 = vand.u32 2147483647, %v193
    %v824 = vand.u32 %v823, 8388607
    %v825 = vor.u32 %v824, 8388608
    %v826 = vsub.s32 0, %v825
    %v827 = vadd.s32 %v822, 1
    %vm828 = vcmp.gt.s32.totalorder %v827, 0
    %v829 = vsel %vm828, %v827, 0
    %v830 = vshrl.u32 %v829, 5
    %v831 = vand.u32 %v829, 31
    %v832 = vsub.s32 32, %v831
    %v833 = vshrl.u32 683565275, %v832
    %v834 = vshll.u32 683565275, %v831
    %v835 = vshrl.u32 2475754826, %v832
    %v836 = vor.u32 %v834, %v835
    %v837 = vshll.u32 2475754826, %v831
    %v838 = vshrl.u32 2131351028, %v832
    %v839 = vor.u32 %v837, %v838
    %v840 = vshll.u32 2131351028, %v831
    %v841 = vshrl.u32 2102212464, %v832
    %v842 = vor.u32 %v840, %v841
    %v843 = vshll.u32 2102212464, %v831
    %v844 = vshrl.u32 920167782, %v832
    %v845 = vor.u32 %v843, %v844
    %v846 = vshll.u32 920167782, %v831
    %v847 = vshrl.u32 1326507024, %v832
    %v848 = vor.u32 %v846, %v847
    %vm849 = vcmp.lt.s32.totalorder %v830, 1
    %vm850 = vcmp.lt.s32.totalorder %v830, 2
    %vm851 = vcmp.lt.s32.totalorder %v830, 3
    %vm852 = vcmp.lt.s32.totalorder %v830, 4
    %v853 = vsel %vm849, %v833, %v836
    %v854 = vsel %vm852, %v842, 2102212464
    %v855 = vsel %vm851, %v839, %v854
    %v856 = vsel %vm850, %v853, %v855
    %v857 = vsel %vm849, %v836, %v839
    %v858 = vsel %vm852, %v845, 920167782
    %v859 = vsel %vm851, %v842, %v858
    %v860 = vsel %vm850, %v857, %v859
    %v861 = vsel %vm849, %v839, %v842
    %v862 = vsel %vm852, %v848, 1326507024
    %v863 = vsel %vm851, %v845, %v862
    %v864 = vsel %vm850, %v861, %v863
    %v865 = vshll.u32 %v825, 8
    %v866 = vand.u32 %v865, 65535
    %v867 = vshrl.u32 %v865, 16
    %v868 = vand.u32 %v864, 65535
    %v869 = vshrl.u32 %v864, 16
    %v870 = vmul.u32 %v866, %v868
    %v871 = vmul.u32 %v866, %v869
    %v872 = vmul.u32 %v867, %v868
    %v873 = vmul.u32 %v867, %v869
    %v874 = vshll.u32 %v871, 16
    %v875 = vshrl.u32 %v871, 16
    %v876 = vshll.u32 %v872, 16
    %v877 = vshrl.u32 %v872, 16
    %vm878 = vc.u32 %v870, %v874
    %v879 = vsel %vm878, 1, 0
    %v880 = vadd.s32 %v870, %v874
    %v881 = vadd.s32 %v873, %v879
    %vm882 = vc.u32 %v880, %v876
    %v883 = vsel %vm882, 1, 0
    %v884 = vadd.s32 %v880, %v876
    %v885 = vadd.s32 %v881, %v883
    %v886 = vadd.s32 %v885, %v875
    %v887 = vadd.s32 %v886, %v877
    %v888 = vand.u32 %v865, 65535
    %v889 = vshrl.u32 %v865, 16
    %v890 = vand.u32 %v860, 65535
    %v891 = vshrl.u32 %v860, 16
    %v892 = vmul.u32 %v888, %v890
    %v893 = vmul.u32 %v888, %v891
    %v894 = vmul.u32 %v889, %v890
    %v895 = vmul.u32 %v889, %v891
    %v896 = vshll.u32 %v893, 16
    %v897 = vshrl.u32 %v893, 16
    %v898 = vshll.u32 %v894, 16
    %v899 = vshrl.u32 %v894, 16
    %vm900 = vc.u32 %v892, %v896
    %v901 = vsel %vm900, 1, 0
    %v902 = vadd.s32 %v892, %v896
    %v903 = vadd.s32 %v895, %v901
    %vm904 = vc.u32 %v902, %v898
    %v905 = vsel %vm904, 1, 0
    %v906 = vadd.s32 %v902, %v898
    %v907 = vadd.s32 %v903, %v905
    %v908 = vadd.s32 %v907, %v897
    %v909 = vadd.s32 %v908, %v899
    %v910 = vmul.u32 %v865, %v856
    %v911 = vadd.s32 %v887, %v906
    %vm912 = vc.u32 %v887, %v906
    %v913 = vadd.s32 %v909, 1
    %v914 = vsel %vm912, %v913, %v909
    %v915 = vadd.s32 %v910, %v914
    %v916 = vadd.s32 %v915, 536870912
    %v917 = vshrl.u32 %v916, 30
    %v918 = vshll.u32 %v917, 30
    %v919 = vsub.s32 %v915, %v918
    %vm920 = vcmp.lt.s32.totalorder %v919, 0
    %v921 = vsub.s32 0, %v919
    %v922 = vsel %vm920, %v921, %v919
    %v923 = vclz %v922
    %v924 = vsub.s32 %v923, 2
    %vm925 = vcmp.gt.s32.totalorder 0, %v924
    %v926 = vsel %vm925, 0, %v924
    %v927 = vsub.s32 32, %v926
    %v928 = vshll.u32 %v919, %v926
    %v929 = vshrl.u32 %v911, %v927
    %v930 = vor.u32 %v928, %v929
    %v931 = vsub.s32 4294967266, %v926
    %v932 = vadd.s32 %v931, 127
    %v933 = vshll.u32 %v932, 23
    %v934 = vor.u32 4788187, %v933
    %v935 = vand.u32 2147483647, %v934
    %v937 = vcvt.s32.f32 %v930
    %v938 = vmul.f32 %v937, %v935
    %v939 = vxor.u32 %v938, 2147483648
    %v940 = vsel %vm819, %v939, %v938
    %v941 = vsub.s32 4, %v917
    %v942 = vsel %vm819, %v941, %v917
    %v943 = vsel %vm818, %v193, %v940
    %v944 = vsel %vm818, 0, %v942
    %v945 = vmul.f32 %v943, %v943
    %v946 = vmul.f32 %v945, -0.001358992
    %v947 = vadd.f32 %v946, 0.041655596
    %v948 = vmul.f32 %v945, %v947
    %v949 = vadd.f32 %v948, -0.4999988
    %v950 = vmul.f32 %v945, %v949
    %v951 = vadd.f32 1.0, %v950
    %v952 = vmul.f32 %v943, %v943
    %v953 = vmul.f32 %v952, -0.00019511016
    %v954 = vadd.f32 %v953, 0.008332121
    %v955 = vmul.f32 %v952, %v954
    %v956 = vadd.f32 %v955, -0.16666654
    %v957 = vmul.f32 %v952, %v956
    %v958 = vadd.f32 %v957, 1.0
    %v959 = vmul.f32 %v958, %v943
    %vm960 = vweird.f32 %v193
    %v961 = vadd.s32 %v944, 3
    %v962 = vand.u32 %v961, 3
    %vm963 = vcmp.lt.s32.totalorder %v962, 2
    %vm964 = vcmp.eq.s32.totalorder %v962, 0
    %v965 = vxor.u32 %v959, 2147483648
    %v966 = vsel %vm964, %v951, %v965
    %vm967 = vcmp.eq.s32.totalorder %v962, 2
    %v968 = vxor.u32 %v951, 2147483648
    %v969 = vsel %vm967, %v968, %v959
    %v970 = vsel %vm963, %v966, %v969
    %v971 = vsel %vm960, nan, %v970
    %v972 = vand.u32 2147483647, %v194
    %vm973 = vcmp.le.f32.partialorder %v972, 0.7853982
    %vm974 = vcmp.lt.s32.totalorder %v194, 0
    %v975 = vand.u32 %v194, 2139095040
    %v976 = vshrl.u32 %v975, 23
    %v977 = vsub.s32 %v976, 127
    %v978 = vand.u32 2147483647, %v194
    %v979 = vand.u32 %v978, 8388607
    %v980 = vor.u32 %v979, 8388608
    %v981 = vsub.s32 0, %v980
    %v982 = vadd.s32 %v977, 1
    %vm983 = vcmp.gt.s32.totalorder %v982, 0
    %v984 = vsel %vm983, %v982, 0
    %v985 = vshrl.u32 %v984, 5
    %v986 = vand.u32 %v984, 31
    %v987 = vsub.s32 32, %v986
    %v988 = vshrl.u32 683565275, %v987
    %v989 = vshll.u32 683565275, %v986
    %v990 = vshrl.u32 2475754826, %v987
    %v991 = vor.u32 %v989, %v990
    %v992 = vshll.u32 2475754826, %v986
    %v993 = vshrl.u32 2131351028, %v987
    %v994 = vor.u32 %v992, %v993
    %v995 = vshll.u32 2131351028, %v986
    %v996 = vshrl.u32 2102212464, %v987
    %v997 = vor.u32 %v995, %v996
    %v998 = vshll.u32 2102212464, %v986
    %v999 = vshrl.u32 920167782, %v987
    %v1000 = vor.u32 %v998, %v999
    %v1001 = vshll.u32 920167782, %v986
    %v1002 = vshrl.u32 1326507024, %v987
    %v1003 = vor.u32 %v1001, %v1002
    %vm1004 = vcmp.lt.s32.totalorder %v985, 1
    %vm1005 = vcmp.lt.s32.totalorder %v985, 2
    %vm1006 = vcmp.lt.s32.totalorder %v985, 3
    %vm1007 = vcmp.lt.s32.totalorder %v985, 4
    %v1008 = vsel %vm1004, %v988, %v991
    %v1009 = vsel %vm1007, %v997, 2102212464
    %v1010 = vsel %vm1006, %v994, %v1009
    %v1011 = vsel %vm1005, %v1008, %v1010
    %v1012 = vsel %vm1004, %v991, %v994
    %v1013 = vsel %vm1007, %v1000, 920167782
    %v1014 = vsel %vm1006, %v997, %v1013
    %v1015 = vsel %vm1005, %v1012, %v1014
    %v1016 = vsel %vm1004, %v994, %v997
    %v1017 = vsel %vm1007, %v1003, 1326507024
    %v1018 = vsel %vm1006, %v1000, %v1017
    %v1019 = vsel %vm1005, %v1016, %v1018
    %v1020 = vshll.u32 %v980, 8
    %v1021 = vand.u32 %v1020, 65535
    %v1022 = vshrl.u32 %v1020, 16
    %v1023 = vand.u32 %v1019, 65535
    %v1024 = vshrl.u32 %v1019, 16
    %v1025 = vmul.u32 %v1021, %v1023
    %v1026 = vmul.u32 %v1021, %v1024
    %v1027 = vmul.u32 %v1022, %v1023
    %v1028 = vmul.u32 %v1022, %v1024
    %v1029 = vshll.u32 %v1026, 16
    %v1030 = vshrl.u32 %v1026, 16
    %v1031 = vshll.u32 %v1027, 16
    %v1032 = vshrl.u32 %v1027, 16
    %vm1033 = vc.u32 %v1025, %v1029
    %v1034 = vsel %vm1033, 1, 0
    %v1035 = vadd.s32 %v1025, %v1029
    %v1036 = vadd.s32 %v1028, %v1034
    %vm1037 = vc.u32 %v1035, %v1031
    %v1038 = vsel %vm1037, 1, 0
    %v1039 = vadd.s32 %v1035, %v1031
    %v1040 = vadd.s32 %v1036, %v1038
    %v1041 = vadd.s32 %v1040, %v1030
    %v1042 = vadd.s32 %v1041, %v1032
    %v1043 = vand.u32 %v1020, 65535
    %v1044 = vshrl.u32 %v1020, 16
    %v1045 = vand.u32 %v1015, 65535
    %v1046 = vshrl.u32 %v1015, 16
    %v1047 = vmul.u32 %v1043, %v1045
    %v1048 = vmul.u32 %v1043, %v1046
    %v1049 = vmul.u32 %v1044, %v1045
    %v1050 = vmul.u32 %v1044, %v1046
    %v1051 = vshll.u32 %v1048, 16
    %v1052 = vshrl.u32 %v1048, 16
    %v1053 = vshll.u32 %v1049, 16
    %v1054 = vshrl.u32 %v1049, 16
    %vm1055 = vc.u32 %v1047, %v1051
    %v1056 = vsel %vm1055, 1, 0
    %v1057 = vadd.s32 %v1047, %v1051
    %v1058 = vadd.s32 %v1050, %v1056
    %vm1059 = vc.u32 %v1057, %v1053
    %v1060 = vsel %vm1059, 1, 0
    %v1061 = vadd.s32 %v1057, %v1053
    %v1062 = vadd.s32 %v1058, %v1060
    %v1063 = vadd.s32 %v1062, %v1052
    %v1064 = vadd.s32 %v1063, %v1054
    %v1065 = vmul.u32 %v1020, %v1011
    %v1066 = vadd.s32 %v1042, %v1061
    %vm1067 = vc.u32 %v1042, %v1061
    %v1068 = vadd.s32 %v1064, 1
    %v1069 = vsel %vm1067, %v1068, %v1064
    %v1070 = vadd.s32 %v1065, %v1069
    %v1071 = vadd.s32 %v1070, 536870912
    %v1072 = vshrl.u32 %v1071, 30
    %v1073 = vshll.u32 %v1072, 30
    %v1074 = vsub.s32 %v1070, %v1073
    %vm1075 = vcmp.lt.s32.totalorder %v1074, 0
    %v1076 = vsub.s32 0, %v1074
    %v1077 = vsel %vm1075, %v1076, %v1074
    %v1078 = vclz %v1077
    %v1079 = vsub.s32 %v1078, 2
    %vm1080 = vcmp.gt.s32.totalorder 0, %v1079
    %v1081 = vsel %vm1080, 0, %v1079
    %v1082 = vsub.s32 32, %v1081
    %v1083 = vshll.u32 %v1074, %v1081
    %v1084 = vshrl.u32 %v1066, %v1082
    %v1085 = vor.u32 %v1083, %v1084
    %v1086 = vsub.s32 4294967266, %v1081
    %v1087 = vadd.s32 %v1086, 127
    %v1088 = vshll.u32 %v1087, 23
    %v1089 = vor.u32 4788187, %v1088
    %v1090 = vand.u32 2147483647, %v1089
    %v1092 = vcvt.s32.f32 %v1085
    %v1093 = vmul.f32 %v1092, %v1090
    %v1094 = vxor.u32 %v1093, 2147483648
    %v1095 = vsel %vm974, %v1094, %v1093
    %v1096 = vsub.s32 4, %v1072
    %v1097 = vsel %vm974, %v1096, %v1072
    %v1098 = vsel %vm973, %v194, %v1095
    %v1099 = vsel %vm973, 0, %v1097
    %v1100 = vmul.f32 %v1098, %v1098
    %v1101 = vmul.f32 %v1100, -0.001358992
    %v1102 = vadd.f32 %v1101, 0.041655596
    %v1103 = vmul.f32 %v1100, %v1102
    %v1104 = vadd.f32 %v1103, -0.4999988
    %v1105 = vmul.f32 %v1100, %v1104
    %v1106 = vadd.f32 1.0, %v1105
    %v1107 = vmul.f32 %v1098, %v1098
    %v1108 = vmul.f32 %v1107, -0.00019511016
    %v1109 = vadd.f32 %v1108, 0.008332121
    %v1110 = vmul.f32 %v1107, %v1109
    %v1111 = vadd.f32 %v1110, -0.16666654
    %v1112 = vmul.f32 %v1107, %v1111
    %v1113 = vadd.f32 %v1112, 1.0
    %v1114 = vmul.f32 %v1113, %v1098
    %vm1115 = vweird.f32 %v194
    %v1116 = vadd.s32 %v1099, 3
    %v1117 = vand.u32 %v1116, 3
    %vm1118 = vcmp.lt.s32.totalorder %v1117, 2
    %vm1119 = vcmp.eq.s32.totalorder %v1117, 0
    %v1120 = vxor.u32 %v1114, 2147483648
    %v1121 = vsel %vm1119, %v1106, %v1120
    %vm1122 = vcmp.eq.s32.totalorder %v1117, 2
    %v1123 = vxor.u32 %v1106, 2147483648
    %v1124 = vsel %vm1122, %v1123, %v1114
    %v1125 = vsel %vm1118, %v1121, %v1124
    %v1126 = vsel %vm1115, nan, %v1125
    %v1127 = vand.u32 2147483647, %v195
    %vm1128 = vcmp.le.f32.partialorder %v1127, 0.7853982
    %vm1129 = vcmp.lt.s32.totalorder %v195, 0
    %v1130 = vand.u32 %v195, 2139095040
    %v1131 = vshrl.u32 %v1130, 23
    %v1132 = vsub.s32 %v1131, 127
    %v1133 = vand.u32 2147483647, %v195
    %v1134 = vand.u32 %v1133, 8388607
    %v1135 = vor.u32 %v1134, 8388608
    %v1136 = vsub.s32 0, %v1135
    %v1137 = vadd.s32 %v1132, 1
    %vm1138 = vcmp.gt.s32.totalorder %v1137, 0
    %v1139 = vsel %vm1138, %v1137, 0
    %v1140 = vshrl.u32 %v1139, 5
    %v1141 = vand.u32 %v1139, 31
    %v1142 = vsub.s32 32, %v1141
    %v1143 = vshrl.u32 683565275, %v1142
    %v1144 = vshll.u32 683565275, %v1141
    %v1145 = vshrl.u32 2475754826, %v1142
    %v1146 = vor.u32 %v1144, %v1145
    %v1147 = vshll.u32 2475754826, %v1141
    %v1148 = vshrl.u32 2131351028, %v1142
    %v1149 = vor.u32 %v1147, %v1148
    %v1150 = vshll.u32 2131351028, %v1141
    %v1151 = vshrl.u32 2102212464, %v1142
    %v1152 = vor.u32 %v1150, %v1151
    %v1153 = vshll.u32 2102212464, %v1141
    %v1154 = vshrl.u32 920167782, %v1142
    %v1155 = vor.u32 %v1153, %v1154
    %v1156 = vshll.u32 920167782, %v1141
    %v1157 = vshrl.u32 1326507024, %v1142
    %v1158 = vor.u32 %v1156, %v1157
    %vm1159 = vcmp.lt.s32.totalorder %v1140, 1
    %vm1160 = vcmp.lt.s32.totalorder %v1140, 2
    %vm1161 = vcmp.lt.s32.totalorder %v1140, 3
    %vm1162 = vcmp.lt.s32.totalorder %v1140, 4
    %v1163 = vsel %vm1159, %v1143, %v1146
    %v1164 = vsel %vm1162, %v1152, 2102212464
    %v1165 = vsel %vm1161, %v1149, %v1164
    %v1166 = vsel %vm1160, %v1163, %v1165
    %v1167 = vsel %vm1159, %v1146, %v1149
    %v1168 = vsel %vm1162, %v1155, 920167782
    %v1169 = vsel %vm1161, %v1152, %v1168
    %v1170 = vsel %vm1160, %v1167, %v1169
    %v1171 = vsel %vm1159, %v1149, %v1152
    %v1172 = vsel %vm1162, %v1158, 1326507024
    %v1173 = vsel %vm1161, %v1155, %v1172
    %v1174 = vsel %vm1160, %v1171, %v1173
    %v1175 = vshll.u32 %v1135, 8
    %v1176 = vand.u32 %v1175, 65535
    %v1177 = vshrl.u32 %v1175, 16
    %v1178 = vand.u32 %v1174, 65535
    %v1179 = vshrl.u32 %v1174, 16
    %v1180 = vmul.u32 %v1176, %v1178
    %v1181 = vmul.u32 %v1176, %v1179
    %v1182 = vmul.u32 %v1177, %v1178
    %v1183 = vmul.u32 %v1177, %v1179
    %v1184 = vshll.u32 %v1181, 16
    %v1185 = vshrl.u32 %v1181, 16
    %v1186 = vshll.u32 %v1182, 16
    %v1187 = vshrl.u32 %v1182, 16
    %vm1188 = vc.u32 %v1180, %v1184
    %v1189 = vsel %vm1188, 1, 0
    %v1190 = vadd.s32 %v1180, %v1184
    %v1191 = vadd.s32 %v1183, %v1189
    %vm1192 = vc.u32 %v1190, %v1186
    %v1193 = vsel %vm1192, 1, 0
    %v1194 = vadd.s32 %v1190, %v1186
    %v1195 = vadd.s32 %v1191, %v1193
    %v1196 = vadd.s32 %v1195, %v1185
    %v1197 = vadd.s32 %v1196, %v1187
    %v1198 = vand.u32 %v1175, 65535
    %v1199 = vshrl.u32 %v1175, 16
    %v1200 = vand.u32 %v1170, 65535
    %v1201 = vshrl.u32 %v1170, 16
    %v1202 = vmul.u32 %v1198, %v1200
    %v1203 = vmul.u32 %v1198, %v1201
    %v1204 = vmul.u32 %v1199, %v1200
    %v1205 = vmul.u32 %v1199, %v1201
    %v1206 = vshll.u32 %v1203, 16
    %v1207 = vshrl.u32 %v1203, 16
    %v1208 = vshll.u32 %v1204, 16
    %v1209 = vshrl.u32 %v1204, 16
    %vm1210 = vc.u32 %v1202, %v1206
    %v1211 = vsel %vm1210, 1, 0
    %v1212 = vadd.s32 %v1202, %v1206
    %v1213 = vadd.s32 %v1205, %v1211
    %vm1214 = vc.u32 %v1212, %v1208
    %v1215 = vsel %vm1214, 1, 0
    %v1216 = vadd.s32 %v1212, %v1208
    %v1217 = vadd.s32 %v1213, %v1215
    %v1218 = vadd.s32 %v1217, %v1207
    %v1219 = vadd.s32 %v1218, %v1209
    %v1220 = vmul.u32 %v1175, %v1166
    %v1221 = vadd.s32 %v1197, %v1216
    %vm1222 = vc.u32 %v1197, %v1216
    %v1223 = vadd.s32 %v1219, 1
    %v1224 = vsel %vm1222, %v1223, %v1219
    %v1225 = vadd.s32 %v1220, %v1224
    %v1226 = vadd.s32 %v1225, 536870912
    %v1227 = vshrl.u32 %v1226, 30
    %v1228 = vshll.u32 %v1227, 30
    %v1229 = vsub.s32 %v1225, %v1228
    %vm1230 = vcmp.lt.s32.totalorder %v1229, 0
    %v1231 = vsub.s32 0, %v1229
    %v1232 = vsel %vm1230, %v1231, %v1229
    %v1233 = vclz %v1232
    %v1234 = vsub.s32 %v1233, 2
    %vm1235 = vcmp.gt.s32.totalorder 0, %v1234
    %v1236 = vsel %vm1235, 0, %v1234
    %v1237 = vsub.s32 32, %v1236
    %v1238 = vshll.u32 %v1229, %v1236
    %v1239 = vshrl.u32 %v1221, %v1237
    %v1240 = vor.u32 %v1238, %v1239
    %v1241 = vsub.s32 4294967266, %v1236
    %v1242 = vadd.s32 %v1241, 127
    %v1243 = vshll.u32 %v1242, 23
    %v1244 = vor.u32 4788187, %v1243
    %v1245 = vand.u32 2147483647, %v1244
    %v1247 = vcvt.s32.f32 %v1240
    %v1248 = vmul.f32 %v1247, %v1245
    %v1249 = vxor.u32 %v1248, 2147483648
    %v1250 = vsel %vm1129, %v1249, %v1248
    %v1251 = vsub.s32 4, %v1227
    %v1252 = vsel %vm1129, %v1251, %v1227
    %v1253 = vsel %vm1128, %v195, %v1250
    %v1254 = vsel %vm1128, 0, %v1252
    %v1255 = vmul.f32 %v1253, %v1253
    %v1256 = vmul.f32 %v1255, -0.001358992
    %v1257 = vadd.f32 %v1256, 0.041655596
    %v1258 = vmul.f32 %v1255, %v1257
    %v1259 = vadd.f32 %v1258, -0.4999988
    %v1260 = vmul.f32 %v1255, %v1259
    %v1261 = vadd.f32 1.0, %v1260
    %v1262 = vmul.f32 %v1253, %v1253
    %v1263 = vmul.f32 %v1262, -0.00019511016
    %v1264 = vadd.f32 %v1263, 0.008332121
    %v1265 = vmul.f32 %v1262, %v1264
    %v1266 = vadd.f32 %v1265, -0.16666654
    %v1267 = vmul.f32 %v1262, %v1266
    %v1268 = vadd.f32 %v1267, 1.0
    %v1269 = vmul.f32 %v1268, %v1253
    %vm1270 = vweird.f32 %v195
    %v1271 = vadd.s32 %v1254, 3
    %v1272 = vand.u32 %v1271, 3
    %vm1273 = vcmp.lt.s32.totalorder %v1272, 2
    %vm1274 = vcmp.eq.s32.totalorder %v1272, 0
    %v1275 = vxor.u32 %v1269, 2147483648
    %v1276 = vsel %vm1274, %v1261, %v1275
    %vm1277 = vcmp.eq.s32.totalorder %v1272, 2
    %v1278 = vxor.u32 %v1261, 2147483648
    %v1279 = vsel %vm1277, %v1278, %v1269
    %v1280 = vsel %vm1273, %v1276, %v1279
    %v1281 = vsel %vm1270, nan, %v1280
    %v1282 = vand.u32 2147483647, %v196
    %vm1283 = vcmp.le.f32.partialorder %v1282, 0.7853982
    %vm1284 = vcmp.lt.s32.totalorder %v196, 0
    %v1285 = vand.u32 %v196, 2139095040
    %v1286 = vshrl.u32 %v1285, 23
    %v1287 = vsub.s32 %v1286, 127
    %v1288 = vand.u32 2147483647, %v196
    %v1289 = vand.u32 %v1288, 8388607
    %v1290 = vor.u32 %v1289, 8388608
    %v1291 = vsub.s32 0, %v1290
    %v1292 = vadd.s32 %v1287, 1
    %vm1293 = vcmp.gt.s32.totalorder %v1292, 0
    %v1294 = vsel %vm1293, %v1292, 0
    %v1295 = vshrl.u32 %v1294, 5
    %v1296 = vand.u32 %v1294, 31
    %v1297 = vsub.s32 32, %v1296
    %v1298 = vshrl.u32 683565275, %v1297
    %v1299 = vshll.u32 683565275, %v1296
    %v1300 = vshrl.u32 2475754826, %v1297
    %v1301 = vor.u32 %v1299, %v1300
    %v1302 = vshll.u32 2475754826, %v1296
    %v1303 = vshrl.u32 2131351028, %v1297
    %v1304 = vor.u32 %v1302, %v1303
    %v1305 = vshll.u32 2131351028, %v1296
    %v1306 = vshrl.u32 2102212464, %v1297
    %v1307 = vor.u32 %v1305, %v1306
    %v1308 = vshll.u32 2102212464, %v1296
    %v1309 = vshrl.u32 920167782, %v1297
    %v1310 = vor.u32 %v1308, %v1309
    %v1311 = vshll.u32 920167782, %v1296
    %v1312 = vshrl.u32 1326507024, %v1297
    %v1313 = vor.u32 %v1311, %v1312
    %vm1314 = vcmp.lt.s32.totalorder %v1295, 1
    %vm1315 = vcmp.lt.s32.totalorder %v1295, 2
    %vm1316 = vcmp.lt.s32.totalorder %v1295, 3
    %vm1317 = vcmp.lt.s32.totalorder %v1295, 4
    %v1318 = vsel %vm1314, %v1298, %v1301
    %v1319 = vsel %vm1317, %v1307, 2102212464
    %v1320 = vsel %vm1316, %v1304, %v1319
    %v1321 = vsel %vm1315, %v1318, %v1320
    %v1322 = vsel %vm1314, %v1301, %v1304
    %v1323 = vsel %vm1317, %v1310, 920167782
    %v1324 = vsel %vm1316, %v1307, %v1323
    %v1325 = vsel %vm1315, %v1322, %v1324
    %v1326 = vsel %vm1314, %v1304, %v1307
    %v1327 = vsel %vm1317, %v1313, 1326507024
    %v1328 = vsel %vm1316, %v1310, %v1327
    %v1329 = vsel %vm1315, %v1326, %v1328
    %v1330 = vshll.u32 %v1290, 8
    %v1331 = vand.u32 %v1330, 65535
    %v1332 = vshrl.u32 %v1330, 16
    %v1333 = vand.u32 %v1329, 65535
    %v1334 = vshrl.u32 %v1329, 16
    %v1335 = vmul.u32 %v1331, %v1333
    %v1336 = vmul.u32 %v1331, %v1334
    %v1337 = vmul.u32 %v1332, %v1333
    %v1338 = vmul.u32 %v1332, %v1334
    %v1339 = vshll.u32 %v1336, 16
    %v1340 = vshrl.u32 %v1336, 16
    %v1341 = vshll.u32 %v1337, 16
    %v1342 = vshrl.u32 %v1337, 16
    %vm1343 = vc.u32 %v1335, %v1339
    %v1344 = vsel %vm1343, 1, 0
    %v1345 = vadd.s32 %v1335, %v1339
    %v1346 = vadd.s32 %v1338, %v1344
    %vm1347 = vc.u32 %v1345, %v1341
    %v1348 = vsel %vm1347, 1, 0
    %v1349 = vadd.s32 %v1345, %v1341
    %v1350 = vadd.s32 %v1346, %v1348
    %v1351 = vadd.s32 %v1350, %v1340
    %v1352 = vadd.s32 %v1351, %v1342
    %v1353 = vand.u32 %v1330, 65535
    %v1354 = vshrl.u32 %v1330, 16
    %v1355 = vand.u32 %v1325, 65535
    %v1356 = vshrl.u32 %v1325, 16
    %v1357 = vmul.u32 %v1353, %v1355
    %v1358 = vmul.u32 %v1353, %v1356
    %v1359 = vmul.u32 %v1354, %v1355
    %v1360 = vmul.u32 %v1354, %v1356
    %v1361 = vshll.u32 %v1358, 16
    %v1362 = vshrl.u32 %v1358, 16
    %v1363 = vshll.u32 %v1359, 16
    %v1364 = vshrl.u32 %v1359, 16
    %vm1365 = vc.u32 %v1357, %v1361
    %v1366 = vsel %vm1365, 1, 0
    %v1367 = vadd.s32 %v1357, %v1361
    %v1368 = vadd.s32 %v1360, %v1366
    %vm1369 = vc.u32 %v1367, %v1363
    %v1370 = vsel %vm1369, 1, 0
    %v1371 = vadd.s32 %v1367, %v1363
    %v1372 = vadd.s32 %v1368, %v1370
    %v1373 = vadd.s32 %v1372, %v1362
    %v1374 = vadd.s32 %v1373, %v1364
    %v1375 = vmul.u32 %v1330, %v1321
    %v1376 = vadd.s32 %v1352, %v1371
    %vm1377 = vc.u32 %v1352, %v1371
    %v1378 = vadd.s32 %v1374, 1
    %v1379 = vsel %vm1377, %v1378, %v1374
    %v1380 = vadd.s32 %v1375, %v1379
    %v1381 = vadd.s32 %v1380, 536870912
    %v1382 = vshrl.u32 %v1381, 30
    %v1383 = vshll.u32 %v1382, 30
    %v1384 = vsub.s32 %v1380, %v1383
    %vm1385 = vcmp.lt.s32.totalorder %v1384, 0
    %v1386 = vsub.s32 0, %v1384
    %v1387 = vsel %vm1385, %v1386, %v1384
    %v1388 = vclz %v1387
    %v1389 = vsub.s32 %v1388, 2
    %vm1390 = vcmp.gt.s32.totalorder 0, %v1389
    %v1391 = vsel %vm1390, 0, %v1389
    %v1392 = vsub.s32 32, %v1391
    %v1393 = vshll.u32 %v1384, %v1391
    %v1394 = vshrl.u32 %v1376, %v1392
    %v1395 = vor.u32 %v1393, %v1394
    %v1396 = vsub.s32 4294967266, %v1391
    %v1397 = vadd.s32 %v1396, 127
    %v1398 = vshll.u32 %v1397, 23
    %v1399 = vor.u32 4788187, %v1398
    %v1400 = vand.u32 2147483647, %v1399
    %v1402 = vcvt.s32.f32 %v1395
    %v1403 = vmul.f32 %v1402, %v1400
    %v1404 = vxor.u32 %v1403, 2147483648
    %v1405 = vsel %vm1284, %v1404, %v1403
    %v1406 = vsub.s32 4, %v1382
    %v1407 = vsel %vm1284, %v1406, %v1382
    %v1408 = vsel %vm1283, %v196, %v1405
    %v1409 = vsel %vm1283, 0, %v1407
    %v1410 = vmul.f32 %v1408, %v1408
    %v1411 = vmul.f32 %v1410, -0.001358992
    %v1412 = vadd.f32 %v1411, 0.041655596
    %v1413 = vmul.f32 %v1410, %v1412
    %v1414 = vadd.f32 %v1413, -0.4999988
    %v1415 = vmul.f32 %v1410, %v1414
    %v1416 = vadd.f32 1.0, %v1415
    %v1417 = vmul.f32 %v1408, %v1408
    %v1418 = vmul.f32 %v1417, -0.00019511016
    %v1419 = vadd.f32 %v1418, 0.008332121
    %v1420 = vmul.f32 %v1417, %v1419
    %v1421 = vadd.f32 %v1420, -0.16666654
    %v1422 = vmul.f32 %v1417, %v1421
    %v1423 = vadd.f32 %v1422, 1.0
    %v1424 = vmul.f32 %v1423, %v1408
    %vm1425 = vweird.f32 %v196
    %v1426 = vadd.s32 %v1409, 3
    %v1427 = vand.u32 %v1426, 3
    %vm1428 = vcmp.lt.s32.totalorder %v1427, 2
    %vm1429 = vcmp.eq.s32.totalorder %v1427, 0
    %v1430 = vxor.u32 %v1424, 2147483648
    %v1431 = vsel %vm1429, %v1416, %v1430
    %vm1432 = vcmp.eq.s32.totalorder %v1427, 2
    %v1433 = vxor.u32 %v1416, 2147483648
    %v1434 = vsel %vm1432, %v1433, %v1424
    %v1435 = vsel %vm1428, %v1431, %v1434
    %v1436 = vsel %vm1425, nan, %v1435
    %v1437 = vmul.f32 %v156, %v971
    %v1438 = vmul.f32 %v168, %v1126
    %v1439 = vmul.f32 %v180, %v1281
    %v1440 = vmul.f32 %v192, %v1436
    %v1445 = vrot.slane %v814, 4
    %v1446 = vrot.slane %v816, 4
    %vm1447 = vcmask 1043456
    %v1448 = vsel %vm1447, %v813, %v1445
    %v1449 = vsel %vm1447, %v815, %v1446
    %1452 = vst [vmem:[#allocation4] sm:$0xff] %v1448
    %1453 = vst [vmem:[#allocation4 + $0x8] sm:$0xff] %v1449
    %v1458 = vrot.slane %v1438, 4
    %v1459 = vrot.slane %v1440, 4
    %v1460 = vsel %vm1447, %v1437, %v1458
    %v1461 = vsel %vm1447, %v1439, %v1459
    %1464 = vst [vmem:[#allocation4 + $0x10] sm:$0xff] %v1460
    %1465 = vst [vmem:[#allocation4 + $0x18] sm:$0xff] %v1461
    // Predicated region
    $region2: #{tpu_custom_call.1} parent=1 // pred_check
      _
    $region3: #{tpu_custom_call.1} parent=1 // pred_check_branch
      %1467 = sbr.rel (0) target = $region5
    $region4: #{tpu_custom_call.1} parent=1 // pred_region
      %1469 = vsyncadd [#allocation5], 0
      %s1471 = sshll.u32 [#allocation4], 4
      %s1472 = int_to_ptr.vmem [resolvable:$true] %s1471
      %s1473 = sshll.u32 %s1, 4
      %s1474 = int_to_ptr.hbm [resolvable:$true] %s1473
      %1476 = dma.vmem_to_hbm [thread:$0]  %s1472, 512, %s1474, [#allocation5]
    $region5: #{tpu_custom_call.1} parent=1 // pred_fallthru
      _
    // Predicated region
    $region6: #{tpu_custom_call.1} parent=1 // pred_check
      _
    $region7: #{tpu_custom_call.1} parent=1 // pred_check_branch
      %1478 = sbr.rel (0) target = $region9
    $region8: #{tpu_custom_call.1} parent=1 // pred_region
      %1480 = dma.done [#allocation5], 512
    $region9: #{tpu_custom_call.1} parent=1 // pred_fallthru
      _
    %1481 = vsyncpa [#allocation5], 1

</llo_original>
